<compile_context>
chip_gen: v7x
topology: tpu7x:2x2x1
jax: 0.10.0
libtpu: 0.0.40
codegen_flags: <defaults>
</compile_context>

<pallas_src>
import functools

import jax
import jax.numpy as jnp
from jax.experimental import pallas as pl
from jax.experimental.pallas import tpu as pltpu


def _round_up(v, m):
    return ((v + m - 1) // m) * m


def _pick_time_chunk(T, time_block):
    """Largest multiple of 8 that divides T (<= time_block); else pad."""
    if T % 8 == 0:
        tt = 8
        for c in range(8, min(T, time_block) + 1, 8):
            if T % c == 0:
                tt = c
        return tt, T
    if T <= time_block:
        tt = _round_up(T, 8)
        return tt, tt
    tt = time_block
    return tt, _round_up(T, tt)


def _lif_chunk_kernel(x_ref, w_ref, spk_ref, act_out_ref,
                      cur_ref, syn_ref, mem_ref, act_ref,
                      *, alpha, beta, thr, mxu_dtype):
    """One (time-chunk, out-tile) grid step of the dense->sparse SNN layer.

    x_ref  : (B, Tt, Din) f32   input block for this time chunk
    w_ref  : (Din, tn)    bf16  weight tile for this out tile
    spk_ref: (B, Tt, tn)  f32   spike output block
    act_out_ref: (1, tn)  f32   "unit ever spiked" output tile
    cur_ref: (B, Tt, tn)  f32   staged synaptic current (scratch)
    syn_ref/mem_ref/act_ref: (num_out_tiles, B, tn) f32 persistent LIF state.
    """
    t_idx = pl.program_id(0)
    n_idx = pl.program_id(1)
    b, tt, din = x_ref.shape
    tn = w_ref.shape[1]

    @pl.when(t_idx == 0)
    def _():
        zeros = jnp.zeros((b, tn), jnp.float32)
        syn_ref[n_idx] = zeros
        mem_ref[n_idx] = zeros
        act_ref[n_idx] = zeros

    # One chunked projection on the MXU: (B*Tt, Din) @ (Din, tn), bf16 inputs
    # with f32 accumulation.  Tt is a multiple of 8 so the fold to (B*Tt, Din)
    # only stacks sublane tiles.  The f32 result is staged in VMEM scratch.
    xm = x_ref[...].reshape(b * tt, din).astype(mxu_dtype)
    cur = jnp.dot(xm, w_ref[...], preferred_element_type=jnp.float32)
    cur_ref[...] = cur.reshape(b, tt, tn)

    # Sequential LIF recurrence over the chunk: 8 timesteps (one sublane tile)
    # per loop iteration, with one dense read of the staged current and one
    # dense spike store per group (batched stores relieve the vst slot).
    # TODO(synk): spike-from-updated-membrane + reset-by-subtraction mirrors
    # the previously accepted implementation; verify against srnn_cuda.py's
    # Dense2SparseSNNLayer (source not available here).
    @pl.loop(0, tt // 8)
    def _(g):
        base = pl.multiple_of(g * 8, 8)
        cur_g = cur_ref[:, pl.ds(base, 8), :]          # (B, 8, tn) f32
        syn = syn_ref[n_idx]
        mem = mem_ref[n_idx]
        act = act_ref[n_idx]
        rows = []
        for r in range(8):                             # static 8-step unroll
            syn = alpha * syn + cur_g[:, r, :]
            mem = beta * mem + syn
            spiked = mem > thr
            spk = spiked.astype(jnp.float32)
            mem = jnp.where(spiked, mem - thr, mem)    # reset by subtraction
            act = jnp.maximum(act, spk)
            rows.append(spk)
        syn_ref[n_idx] = syn
        mem_ref[n_idx] = mem
        act_ref[n_idx] = act
        spk_g = jnp.stack(rows, axis=1)                # (B, 8, tn)
        spk_ref[:, pl.ds(base, 8), :] = spk_g.astype(spk_ref.dtype)

    # Fused active-unit reduction: emit the tile's activity vector once, at
    # the last time chunk (final write per out tile wins).
    @pl.when(t_idx == pl.num_programs(0) - 1)
    def _():
        act_out_ref[...] = jnp.max(act_ref[n_idx], axis=0, keepdims=True)


def dense2sparse_snn_layer(x, w, nb_hidden, out_dim, args, *,
                           time_block=128, n_block=256,
                           mxu_dtype=jnp.bfloat16):
    """JAX/Pallas equivalent of Dense2SparseSNNLayer(x, dweight_w, ...).

    x: (B, T, in_dim) float32, w: (in_dim, out_dim) float32.
    Returns (spk_rec (B, T, out_dim) f32, aout_idx (out_dim,) int32, -1 pad).
    """
    # nb_hidden is unused by the dense->sparse projection (weight is
    # (in_dim, out_dim)); kept for signature parity with PyTorch.
    del nb_hidden
    B, T, Din = x.shape
    assert w.shape == (Din, out_dim)
    alpha = float(args["alpha"])
    beta = float(args["beta"])
    thr = float(args.get("threshold", 1.0))

    # Lane-dense output tiles (unmasked stores, good MXU N fill).
    tn = min(_round_up(n_block, 128), _round_up(out_dim, 128))
    N_pad = _round_up(out_dim, tn)
    nn = N_pad // tn

    # Bound the per-chunk working set (v7x has only 64 MiB VMEM): shrink the
    # time chunk if the double-buffered x / spike blocks + staged current
    # would blow past ~24 MiB.
    din_p = _round_up(Din, 128)

    def _chunk_bytes(tt_):
        return 4 * (2 * B * tt_ * din_p + 3 * B * tt_ * tn)

    tb = max(8, (time_block // 8) * 8)
    while tb > 8 and _chunk_bytes(tb) > 24 * 1024 * 1024:
        tb //= 2

    # Prefer a chunk that divides T exactly -> no time padding and no
    # post-kernel slice pass over the time axis.
    Tt, T_pad = _pick_time_chunk(T, tb)
    nt = T_pad // Tt

    x_p = x if T_pad == T else jnp.pad(x, ((0, 0), (0, T_pad - T), (0, 0)))
    # Weight: pad to lane-dense N and cast once to bf16 (it is re-streamed
    # once per grid step; x is read exactly once and cast in-kernel instead).
    w_p = w if N_pad == out_dim else jnp.pad(w, ((0, 0), (0, N_pad - out_dim)))
    w_p = w_p.astype(mxu_dtype)

    kernel = functools.partial(_lif_chunk_kernel, alpha=alpha, beta=beta,
                               thr=thr, mxu_dtype=mxu_dtype)

    # VMEM budget: double-buffered pipeline blocks + scratch, with headroom.
    pad8 = lambda v: _round_up(v, 8)
    mxu_bytes = jnp.dtype(mxu_dtype).itemsize
    vmem_bytes = (
        2 * B * Tt * din_p * 4              # x input blocks (f32)
        + 2 * pad8(Din) * tn * mxu_bytes    # weight blocks
        + 2 * B * Tt * tn * 4               # spike output blocks (f32)
        + 2 * 8 * tn * 4                    # active output blocks
        + B * Tt * tn * 4                   # staged current scratch
        + 3 * nn * pad8(B) * tn * 4         # syn / mem / activity scratch
    )
    vmem_limit = int(min(128 * 1024 * 1024,
                         max(32 * 1024 * 1024, 2 * vmem_bytes)))

    # TODO(synk): spikes are exactly 0/1; emitting bf16/int8 spikes would
    # halve/quarter the dominant HBM write, but f32 is kept to preserve the
    # PyTorch module's output dtype.
    spk_pad, act_pad = pl.pallas_call(
        kernel,
        out_shape=(
            jax.ShapeDtypeStruct((B, T_pad, N_pad), jnp.float32),
            jax.ShapeDtypeStruct((1, N_pad), jnp.float32),
        ),
        grid_spec=pltpu.PrefetchScalarGridSpec(
            num_scalar_prefetch=0,
            # Time is the OUTER axis so x's block index (independent of the
            # out tile) only changes once per time chunk -> x is streamed
            # from HBM exactly once; only the small weight tile is re-fetched
            # per grid step.  The LIF state is carried per out tile in VMEM.
            grid=(nt, nn),
            in_specs=[
                pl.BlockSpec((B, Tt, Din), lambda t, n: (0, t, 0)),
                pl.BlockSpec((Din, tn), lambda t, n: (0, n)),
            ],
            out_specs=[
                pl.BlockSpec((B, Tt, tn), lambda t, n: (0, t, n)),
                pl.BlockSpec((1, tn), lambda t, n: (0, n)),
            ],
            scratch_shapes=[
                pltpu.VMEM((B, Tt, tn), jnp.float32),   # staged current
                pltpu.VMEM((nn, B, tn), jnp.float32),   # synaptic current
                pltpu.VMEM((nn, B, tn), jnp.float32),   # membrane potential
                pltpu.VMEM((nn, B, tn), jnp.float32),   # per-unit activity
            ],
        ),
        compiler_params=pltpu.CompilerParams(
            # TODO(synk): on v7x (2 TensorCores) a leading "parallel" batch
            # axis would engage both cores; parallel dims must be grid-major,
            # which conflicts with keeping x single-streamed, so both axes
            # stay "arbitrary" here.
            dimension_semantics=("arbitrary", "arbitrary"),
            vmem_limit_bytes=vmem_limit,
        ),
    )(x_p, w_p)

    spk_rec = spk_pad
    if T_pad != T or N_pad != out_dim:
        spk_rec = spk_pad[:, :T, :out_dim]

    # TODO(synk): exact aout_idx semantics of the CUDA Dense2SparseSNNLayer
    # are not available; return indices of units that spiked at least once,
    # padded with -1 to a static length.
    if T_pad == T:
        active = act_pad[0, :out_dim] > 0.0        # fused in-kernel reduction
    else:
        # Padded timesteps could emit spurious spikes (they are sliced out of
        # spk_rec), so recompute activity from the valid range in that case.
        active = jnp.sum(spk_rec, axis=(0, 1)) > 0.0
    aout_idx = jnp.nonzero(active, size=out_dim, fill_value=-1)[0].astype(jnp.int32)
    return spk_rec, aout_idx


class SNNDense2sparse:
    """JAX port of the PyTorch SNNDense2sparse module."""

    def __init__(self, in_dim, nb_hidden, out_dim, args, key):
        self.in_dim = in_dim
        self.nb_hidden = nb_hidden
        self.out_dim = out_dim
        self.args = args
        # xavier_uniform_ equivalent: U(-a, a), a = sqrt(6 / (fan_in + fan_out)).
        limit = (6.0 / (in_dim + out_dim)) ** 0.5
        self.dweight_w = jax.random.uniform(
            key, (in_dim, out_dim), minval=-limit, maxval=limit,
            dtype=jnp.float32)

    def __call__(self, x):
        return dense2sparse_snn_layer(
            x, self.dweight_w, self.nb_hidden, self.out_dim, self.args)


if __name__ == "__main__":
    key = jax.random.PRNGKey(0)
    kw, kx = jax.random.split(key)

    B, T, IN_DIM, NB_HIDDEN, OUT_DIM = 2, 8, 32, 32, 32
    args = {"device": "tpu", "alpha": 0.9, "beta": 0.8, "threshold": 1.0}

    module = SNNDense2sparse(IN_DIM, NB_HIDDEN, OUT_DIM, args, kw)
    x = jax.random.normal(kx, (B, T, IN_DIM), dtype=jnp.float32)

    spk_rec, aout_idx = module(x)
    jax.block_until_ready((spk_rec, aout_idx))

    assert spk_rec.shape == (B, T, OUT_DIM)
    assert spk_rec.dtype == jnp.float32
    assert aout_idx.shape == (OUT_DIM,)
    assert aout_idx.dtype == jnp.int32

    print("KERNEL_OK")
</pallas_src>

<mosaic_0001>
module attributes {stable_mosaic.version = 11 : i64} {
  func.func @_lif_chunk_kernel(%arg0: i32, %arg1: i32, %arg2: memref<2x8x32xf32, #tpu.memory_space<vmem>>, %arg3: memref<32x128xbf16, #tpu.memory_space<vmem>>, %arg4: memref<2x8x128xf32, #tpu.memory_space<vmem>>, %arg5: memref<1x128xf32, #tpu.memory_space<vmem>>, %arg6: memref<2x8x128xf32, #tpu.memory_space<vmem>>, %arg7: memref<1x2x128xf32, #tpu.memory_space<vmem>>, %arg8: memref<1x2x128xf32, #tpu.memory_space<vmem>>, %arg9: memref<1x2x128xf32, #tpu.memory_space<vmem>>) attributes {dimension_semantics = [#tpu.dimension_semantics<arbitrary>, #tpu.dimension_semantics<arbitrary>], iteration_bounds = array<i64: 1, 1>, scalar_prefetch = 0 : i64, scratch_operands = 4 : i64, tpu.core_type = #tpu.core_type<tc>, window_params = [{transform_indices = @transform_0, window_bounds = array<i64: 2, 8, 32>}, {transform_indices = @transform_1, window_bounds = array<i64: 32, 128>}, {transform_indices = @transform_2, window_bounds = array<i64: 2, 8, 128>}, {transform_indices = @transform_3, window_bounds = array<i64: 1, 128>}]} {
    %c0_i32 = arith.constant 0 : i32
    %0 = arith.cmpi eq, %arg0, %c0_i32 : i32
    %1 = arith.extui %0 : i1 to i32
    %c0_i32_0 = arith.constant 0 : i32
    %2 = arith.cmpi ne, %1, %c0_i32_0 : i32
    scf.if %2 {
      %cst_61 = arith.constant 0.000000e+00 : f32
      %179 = vector.broadcast %cst_61 : f32 to vector<2x128xf32>
      %180 = arith.index_cast %arg1 : i32 to index
      %c0_62 = arith.constant 0 : index
      %c0_63 = arith.constant 0 : index
      %181 = vector.load %arg7[%180, %c0_62, %c0_63] : memref<1x2x128xf32, #tpu.memory_space<vmem>>, vector<1x2x128xf32>
      %182 = vector.shape_cast %181 : vector<1x2x128xf32> to vector<2x128xf32>
      %183 = vector.shape_cast %179 : vector<2x128xf32> to vector<1x2x128xf32>
      tpu.vector_store %arg7[%180, %c0_62, %c0_63], %183 {strides = array<i32>} : memref<1x2x128xf32, #tpu.memory_space<vmem>>, vector<1x2x128xf32>,
      %184 = arith.index_cast %arg1 : i32 to index
      %c0_64 = arith.constant 0 : index
      %c0_65 = arith.constant 0 : index
      %185 = vector.load %arg8[%184, %c0_64, %c0_65] : memref<1x2x128xf32, #tpu.memory_space<vmem>>, vector<1x2x128xf32>
      %186 = vector.shape_cast %185 : vector<1x2x128xf32> to vector<2x128xf32>
      %187 = vector.shape_cast %179 : vector<2x128xf32> to vector<1x2x128xf32>
      tpu.vector_store %arg8[%184, %c0_64, %c0_65], %187 {strides = array<i32>} : memref<1x2x128xf32, #tpu.memory_space<vmem>>, vector<1x2x128xf32>,
      %188 = arith.index_cast %arg1 : i32 to index
      %c0_66 = arith.constant 0 : index
      %c0_67 = arith.constant 0 : index
      %189 = vector.load %arg9[%188, %c0_66, %c0_67] : memref<1x2x128xf32, #tpu.memory_space<vmem>>, vector<1x2x128xf32>
      %190 = vector.shape_cast %189 : vector<1x2x128xf32> to vector<2x128xf32>
      %191 = vector.shape_cast %179 : vector<2x128xf32> to vector<1x2x128xf32>
      tpu.vector_store %arg9[%188, %c0_66, %c0_67], %191 {strides = array<i32>} : memref<1x2x128xf32, #tpu.memory_space<vmem>>, vector<1x2x128xf32>,
    } else {
    }
    %c0 = arith.constant 0 : index
    %c0_1 = arith.constant 0 : index
    %c0_2 = arith.constant 0 : index
    %3 = vector.load %arg2[%c0, %c0_1, %c0_2] : memref<2x8x32xf32, #tpu.memory_space<vmem>>, vector<2x8x32xf32>
    %4 = vector.shape_cast %3 : vector<2x8x32xf32> to vector<16x32xf32>
    %5 = arith.truncf %4 : vector<16x32xf32> to vector<16x32xbf16>
    %c0_3 = arith.constant 0 : index
    %c0_4 = arith.constant 0 : index
    %6 = vector.load %arg3[%c0_3, %c0_4] : memref<32x128xbf16, #tpu.memory_space<vmem>>, vector<32x128xbf16>
    %cst = arith.constant dense<0.000000e+00> : vector<16x128xf32>
    %7 = tpu.matmul %5, %6, %cst {dimension_numbers = #tpu.dot_dimension_numbers<[1], [0], [0], [1], [0, 0, 1, 1], [], []>} : vector<16x32xbf16>, vector<32x128xbf16>, vector<16x128xf32> -> vector<16x128xf32>
    %8 = vector.shape_cast %7 : vector<16x128xf32> to vector<2x8x128xf32>
    %c0_5 = arith.constant 0 : index
    %c0_6 = arith.constant 0 : index
    %c0_7 = arith.constant 0 : index
    %9 = vector.load %arg6[%c0_5, %c0_6, %c0_7] : memref<2x8x128xf32, #tpu.memory_space<vmem>>, vector<2x8x128xf32>
    tpu.vector_store %arg6[%c0_5, %c0_6, %c0_7], %8 {strides = array<i32>} : memref<2x8x128xf32, #tpu.memory_space<vmem>>, vector<2x8x128xf32>,
    %c0_i32_8 = arith.constant 0 : i32
    %c1_i32 = arith.constant 1 : i32
    %10 = arith.muli %c0_i32_8, %c1_i32 : i32
    %c0_i32_9 = arith.constant 0 : i32
    %11 = arith.addi %c0_i32_9, %10 : i32
    %c8_i32 = arith.constant 8 : i32
    %12 = arith.muli %11, %c8_i32 : i32
    %13 = tpu.assume_multiple %12, 8 : i32
    %c0_10 = arith.constant 0 : index
    %14 = arith.index_cast %13 : i32 to index
    %c0_11 = arith.constant 0 : index
    %15 = vector.load %arg6[%c0_10, %14, %c0_11] : memref<2x8x128xf32, #tpu.memory_space<vmem>>, vector<2x8x128xf32>
    %16 = arith.index_cast %arg1 : i32 to index
    %c0_12 = arith.constant 0 : index
    %c0_13 = arith.constant 0 : index
    %17 = vector.load %arg7[%16, %c0_12, %c0_13] : memref<1x2x128xf32, #tpu.memory_space<vmem>>, vector<1x2x128xf32>
    %18 = vector.shape_cast %17 : vector<1x2x128xf32> to vector<2x128xf32>
    %19 = arith.index_cast %arg1 : i32 to index
    %c0_14 = arith.constant 0 : index
    %c0_15 = arith.constant 0 : index
    %20 = vector.load %arg8[%19, %c0_14, %c0_15] : memref<1x2x128xf32, #tpu.memory_space<vmem>>, vector<1x2x128xf32>
    %21 = vector.shape_cast %20 : vector<1x2x128xf32> to vector<2x128xf32>
    %22 = arith.index_cast %arg1 : i32 to index
    %c0_16 = arith.constant 0 : index
    %c0_17 = arith.constant 0 : index
    %23 = vector.load %arg9[%22, %c0_16, %c0_17] : memref<1x2x128xf32, #tpu.memory_space<vmem>>, vector<1x2x128xf32>
    %24 = vector.shape_cast %23 : vector<1x2x128xf32> to vector<2x128xf32>
    %cst_18 = arith.constant 0.899999976 : f32
    %25 = vector.broadcast %cst_18 : f32 to vector<2x128xf32>
    %26 = arith.mulf %25, %18 : vector<2x128xf32>
    %27 = vector.extract_strided_slice %15 {offsets = [0, 0, 0], sizes = [2, 1, 128], strides = [1, 1, 1]} : vector<2x8x128xf32> to vector<2x1x128xf32>
    %28 = vector.shape_cast %27 : vector<2x1x128xf32> to vector<2x128xf32>
    %29 = arith.addf %26, %28 : vector<2x128xf32>
    %cst_19 = arith.constant 8.000000e-01 : f32
    %30 = vector.broadcast %cst_19 : f32 to vector<2x128xf32>
    %31 = arith.mulf %30, %21 : vector<2x128xf32>
    %32 = arith.addf %31, %29 : vector<2x128xf32>
    %cst_20 = arith.constant 1.000000e+00 : f32
    %33 = vector.broadcast %cst_20 : f32 to vector<2x128xf32>
    %34 = arith.cmpf ogt, %32, %33 : vector<2x128xf32>
    %35 = arith.extui %34 : vector<2x128xi1> to vector<2x128xi32>
    %36 = arith.sitofp %35 : vector<2x128xi32> to vector<2x128xf32>
    %cst_21 = arith.constant 1.000000e+00 : f32
    %37 = vector.broadcast %cst_21 : f32 to vector<2x128xf32>
    %38 = arith.subf %32, %37 : vector<2x128xf32>
    %39 = arith.select %34, %38, %32 : vector<2x128xi1>, vector<2x128xf32>
    %40 = arith.maximumf %24, %36 : vector<2x128xf32>
    %cst_22 = arith.constant 0.899999976 : f32
    %41 = vector.broadcast %cst_22 : f32 to vector<2x128xf32>
    %42 = arith.mulf %41, %29 : vector<2x128xf32>
    %43 = vector.extract_strided_slice %15 {offsets = [0, 1, 0], sizes = [2, 1, 128], strides = [1, 1, 1]} : vector<2x8x128xf32> to vector<2x1x128xf32>
    %44 = vector.shape_cast %43 : vector<2x1x128xf32> to vector<2x128xf32>
    %45 = arith.addf %42, %44 : vector<2x128xf32>
    %cst_23 = arith.constant 8.000000e-01 : f32
    %46 = vector.broadcast %cst_23 : f32 to vector<2x128xf32>
    %47 = arith.mulf %46, %39 : vector<2x128xf32>
    %48 = arith.addf %47, %45 : vector<2x128xf32>
    %cst_24 = arith.constant 1.000000e+00 : f32
    %49 = vector.broadcast %cst_24 : f32 to vector<2x128xf32>
    %50 = arith.cmpf ogt, %48, %49 : vector<2x128xf32>
    %51 = arith.extui %50 : vector<2x128xi1> to vector<2x128xi32>
    %52 = arith.sitofp %51 : vector<2x128xi32> to vector<2x128xf32>
    %cst_25 = arith.constant 1.000000e+00 : f32
    %53 = vector.broadcast %cst_25 : f32 to vector<2x128xf32>
    %54 = arith.subf %48, %53 : vector<2x128xf32>
    %55 = arith.select %50, %54, %48 : vector<2x128xi1>, vector<2x128xf32>
    %56 = arith.maximumf %40, %52 : vector<2x128xf32>
    %cst_26 = arith.constant 0.899999976 : f32
    %57 = vector.broadcast %cst_26 : f32 to vector<2x128xf32>
    %58 = arith.mulf %57, %45 : vector<2x128xf32>
    %59 = vector.extract_strided_slice %15 {offsets = [0, 2, 0], sizes = [2, 1, 128], strides = [1, 1, 1]} : vector<2x8x128xf32> to vector<2x1x128xf32>
    %60 = vector.shape_cast %59 : vector<2x1x128xf32> to vector<2x128xf32>
    %61 = arith.addf %58, %60 : vector<2x128xf32>
    %cst_27 = arith.constant 8.000000e-01 : f32
    %62 = vector.broadcast %cst_27 : f32 to vector<2x128xf32>
    %63 = arith.mulf %62, %55 : vector<2x128xf32>
    %64 = arith.addf %63, %61 : vector<2x128xf32>
    %cst_28 = arith.constant 1.000000e+00 : f32
    %65 = vector.broadcast %cst_28 : f32 to vector<2x128xf32>
    %66 = arith.cmpf ogt, %64, %65 : vector<2x128xf32>
    %67 = arith.extui %66 : vector<2x128xi1> to vector<2x128xi32>
    %68 = arith.sitofp %67 : vector<2x128xi32> to vector<2x128xf32>
    %cst_29 = arith.constant 1.000000e+00 : f32
    %69 = vector.broadcast %cst_29 : f32 to vector<2x128xf32>
    %70 = arith.subf %64, %69 : vector<2x128xf32>
    %71 = arith.select %66, %70, %64 : vector<2x128xi1>, vector<2x128xf32>
    %72 = arith.maximumf %56, %68 : vector<2x128xf32>
    %cst_30 = arith.constant 0.899999976 : f32
    %73 = vector.broadcast %cst_30 : f32 to vector<2x128xf32>
    %74 = arith.mulf %73, %61 : vector<2x128xf32>
    %75 = vector.extract_strided_slice %15 {offsets = [0, 3, 0], sizes = [2, 1, 128], strides = [1, 1, 1]} : vector<2x8x128xf32> to vector<2x1x128xf32>
    %76 = vector.shape_cast %75 : vector<2x1x128xf32> to vector<2x128xf32>
    %77 = arith.addf %74, %76 : vector<2x128xf32>
    %cst_31 = arith.constant 8.000000e-01 : f32
    %78 = vector.broadcast %cst_31 : f32 to vector<2x128xf32>
    %79 = arith.mulf %78, %71 : vector<2x128xf32>
    %80 = arith.addf %79, %77 : vector<2x128xf32>
    %cst_32 = arith.constant 1.000000e+00 : f32
    %81 = vector.broadcast %cst_32 : f32 to vector<2x128xf32>
    %82 = arith.cmpf ogt, %80, %81 : vector<2x128xf32>
    %83 = arith.extui %82 : vector<2x128xi1> to vector<2x128xi32>
    %84 = arith.sitofp %83 : vector<2x128xi32> to vector<2x128xf32>
    %cst_33 = arith.constant 1.000000e+00 : f32
    %85 = vector.broadcast %cst_33 : f32 to vector<2x128xf32>
    %86 = arith.subf %80, %85 : vector<2x128xf32>
    %87 = arith.select %82, %86, %80 : vector<2x128xi1>, vector<2x128xf32>
    %88 = arith.maximumf %72, %84 : vector<2x128xf32>
    %cst_34 = arith.constant 0.899999976 : f32
    %89 = vector.broadcast %cst_34 : f32 to vector<2x128xf32>
    %90 = arith.mulf %89, %77 : vector<2x128xf32>
    %91 = vector.extract_strided_slice %15 {offsets = [0, 4, 0], sizes = [2, 1, 128], strides = [1, 1, 1]} : vector<2x8x128xf32> to vector<2x1x128xf32>
    %92 = vector.shape_cast %91 : vector<2x1x128xf32> to vector<2x128xf32>
    %93 = arith.addf %90, %92 : vector<2x128xf32>
    %cst_35 = arith.constant 8.000000e-01 : f32
    %94 = vector.broadcast %cst_35 : f32 to vector<2x128xf32>
    %95 = arith.mulf %94, %87 : vector<2x128xf32>
    %96 = arith.addf %95, %93 : vector<2x128xf32>
    %cst_36 = arith.constant 1.000000e+00 : f32
    %97 = vector.broadcast %cst_36 : f32 to vector<2x128xf32>
    %98 = arith.cmpf ogt, %96, %97 : vector<2x128xf32>
    %99 = arith.extui %98 : vector<2x128xi1> to vector<2x128xi32>
    %100 = arith.sitofp %99 : vector<2x128xi32> to vector<2x128xf32>
    %cst_37 = arith.constant 1.000000e+00 : f32
    %101 = vector.broadcast %cst_37 : f32 to vector<2x128xf32>
    %102 = arith.subf %96, %101 : vector<2x128xf32>
    %103 = arith.select %98, %102, %96 : vector<2x128xi1>, vector<2x128xf32>
    %104 = arith.maximumf %88, %100 : vector<2x128xf32>
    %cst_38 = arith.constant 0.899999976 : f32
    %105 = vector.broadcast %cst_38 : f32 to vector<2x128xf32>
    %106 = arith.mulf %105, %93 : vector<2x128xf32>
    %107 = vector.extract_strided_slice %15 {offsets = [0, 5, 0], sizes = [2, 1, 128], strides = [1, 1, 1]} : vector<2x8x128xf32> to vector<2x1x128xf32>
    %108 = vector.shape_cast %107 : vector<2x1x128xf32> to vector<2x128xf32>
    %109 = arith.addf %106, %108 : vector<2x128xf32>
    %cst_39 = arith.constant 8.000000e-01 : f32
    %110 = vector.broadcast %cst_39 : f32 to vector<2x128xf32>
    %111 = arith.mulf %110, %103 : vector<2x128xf32>
    %112 = arith.addf %111, %109 : vector<2x128xf32>
    %cst_40 = arith.constant 1.000000e+00 : f32
    %113 = vector.broadcast %cst_40 : f32 to vector<2x128xf32>
    %114 = arith.cmpf ogt, %112, %113 : vector<2x128xf32>
    %115 = arith.extui %114 : vector<2x128xi1> to vector<2x128xi32>
    %116 = arith.sitofp %115 : vector<2x128xi32> to vector<2x128xf32>
    %cst_41 = arith.constant 1.000000e+00 : f32
    %117 = vector.broadcast %cst_41 : f32 to vector<2x128xf32>
    %118 = arith.subf %112, %117 : vector<2x128xf32>
    %119 = arith.select %114, %118, %112 : vector<2x128xi1>, vector<2x128xf32>
    %120 = arith.maximumf %104, %116 : vector<2x128xf32>
    %cst_42 = arith.constant 0.899999976 : f32
    %121 = vector.broadcast %cst_42 : f32 to vector<2x128xf32>
    %122 = arith.mulf %121, %109 : vector<2x128xf32>
    %123 = vector.extract_strided_slice %15 {offsets = [0, 6, 0], sizes = [2, 1, 128], strides = [1, 1, 1]} : vector<2x8x128xf32> to vector<2x1x128xf32>
    %124 = vector.shape_cast %123 : vector<2x1x128xf32> to vector<2x128xf32>
    %125 = arith.addf %122, %124 : vector<2x128xf32>
    %cst_43 = arith.constant 8.000000e-01 : f32
    %126 = vector.broadcast %cst_43 : f32 to vector<2x128xf32>
    %127 = arith.mulf %126, %119 : vector<2x128xf32>
    %128 = arith.addf %127, %125 : vector<2x128xf32>
    %cst_44 = arith.constant 1.000000e+00 : f32
    %129 = vector.broadcast %cst_44 : f32 to vector<2x128xf32>
    %130 = arith.cmpf ogt, %128, %129 : vector<2x128xf32>
    %131 = arith.extui %130 : vector<2x128xi1> to vector<2x128xi32>
    %132 = arith.sitofp %131 : vector<2x128xi32> to vector<2x128xf32>
    %cst_45 = arith.constant 1.000000e+00 : f32
    %133 = vector.broadcast %cst_45 : f32 to vector<2x128xf32>
    %134 = arith.subf %128, %133 : vector<2x128xf32>
    %135 = arith.select %130, %134, %128 : vector<2x128xi1>, vector<2x128xf32>
    %136 = arith.maximumf %120, %132 : vector<2x128xf32>
    %cst_46 = arith.constant 0.899999976 : f32
    %137 = vector.broadcast %cst_46 : f32 to vector<2x128xf32>
    %138 = arith.mulf %137, %125 : vector<2x128xf32>
    %139 = vector.extract_strided_slice %15 {offsets = [0, 7, 0], sizes = [2, 1, 128], strides = [1, 1, 1]} : vector<2x8x128xf32> to vector<2x1x128xf32>
    %140 = vector.shape_cast %139 : vector<2x1x128xf32> to vector<2x128xf32>
    %141 = arith.addf %138, %140 : vector<2x128xf32>
    %cst_47 = arith.constant 8.000000e-01 : f32
    %142 = vector.broadcast %cst_47 : f32 to vector<2x128xf32>
    %143 = arith.mulf %142, %135 : vector<2x128xf32>
    %144 = arith.addf %143, %141 : vector<2x128xf32>
    %cst_48 = arith.constant 1.000000e+00 : f32
    %145 = vector.broadcast %cst_48 : f32 to vector<2x128xf32>
    %146 = arith.cmpf ogt, %144, %145 : vector<2x128xf32>
    %147 = arith.extui %146 : vector<2x128xi1> to vector<2x128xi32>
    %148 = arith.sitofp %147 : vector<2x128xi32> to vector<2x128xf32>
    %cst_49 = arith.constant 1.000000e+00 : f32
    %149 = vector.broadcast %cst_49 : f32 to vector<2x128xf32>
    %150 = arith.subf %144, %149 : vector<2x128xf32>
    %151 = arith.select %146, %150, %144 : vector<2x128xi1>, vector<2x128xf32>
    %152 = arith.maximumf %136, %148 : vector<2x128xf32>
    %153 = arith.index_cast %arg1 : i32 to index
    %c0_50 = arith.constant 0 : index
    %c0_51 = arith.constant 0 : index
    %154 = vector.load %arg7[%153, %c0_50, %c0_51] : memref<1x2x128xf32, #tpu.memory_space<vmem>>, vector<1x2x128xf32>
    %155 = vector.shape_cast %154 : vector<1x2x128xf32> to vector<2x128xf32>
    %156 = vector.shape_cast %141 : vector<2x128xf32> to vector<1x2x128xf32>
    tpu.vector_store %arg7[%153, %c0_50, %c0_51], %156 {strides = array<i32>} : memref<1x2x128xf32, #tpu.memory_space<vmem>>, vector<1x2x128xf32>,
    %157 = arith.index_cast %arg1 : i32 to index
    %c0_52 = arith.constant 0 : index
    %c0_53 = arith.constant 0 : index
    %158 = vector.load %arg8[%157, %c0_52, %c0_53] : memref<1x2x128xf32, #tpu.memory_space<vmem>>, vector<1x2x128xf32>
    %159 = vector.shape_cast %158 : vector<1x2x128xf32> to vector<2x128xf32>
    %160 = vector.shape_cast %151 : vector<2x128xf32> to vector<1x2x128xf32>
    tpu.vector_store %arg8[%157, %c0_52, %c0_53], %160 {strides = array<i32>} : memref<1x2x128xf32, #tpu.memory_space<vmem>>, vector<1x2x128xf32>,
    %161 = arith.index_cast %arg1 : i32 to index
    %c0_54 = arith.constant 0 : index
    %c0_55 = arith.constant 0 : index
    %162 = vector.load %arg9[%161, %c0_54, %c0_55] : memref<1x2x128xf32, #tpu.memory_space<vmem>>, vector<1x2x128xf32>
    %163 = vector.shape_cast %162 : vector<1x2x128xf32> to vector<2x128xf32>
    %164 = vector.shape_cast %152 : vector<2x128xf32> to vector<1x2x128xf32>
    tpu.vector_store %arg9[%161, %c0_54, %c0_55], %164 {strides = array<i32>} : memref<1x2x128xf32, #tpu.memory_space<vmem>>, vector<1x2x128xf32>,
    %165 = vector.shape_cast %36 : vector<2x128xf32> to vector<2x1x128xf32>
    %166 = vector.shape_cast %52 : vector<2x128xf32> to vector<2x1x128xf32>
    %167 = vector.shape_cast %68 : vector<2x128xf32> to vector<2x1x128xf32>
    %168 = vector.shape_cast %84 : vector<2x128xf32> to vector<2x1x128xf32>
    %169 = vector.shape_cast %100 : vector<2x128xf32> to vector<2x1x128xf32>
    %170 = vector.shape_cast %116 : vector<2x128xf32> to vector<2x1x128xf32>
    %171 = vector.shape_cast %132 : vector<2x128xf32> to vector<2x1x128xf32>
    %172 = vector.shape_cast %148 : vector<2x128xf32> to vector<2x1x128xf32>
    %173 = tpu.concatenate %165, %166, %167, %168, %169, %170, %171, %172 in 1 : vector<2x1x128xf32>, vector<2x1x128xf32>, vector<2x1x128xf32>, vector<2x1x128xf32>, vector<2x1x128xf32>, vector<2x1x128xf32>, vector<2x1x128xf32>, vector<2x1x128xf32> -> vector<2x8x128xf32>
    %c0_56 = arith.constant 0 : index
    %174 = arith.index_cast %13 : i32 to index
    %c0_57 = arith.constant 0 : index
    %175 = vector.load %arg4[%c0_56, %174, %c0_57] : memref<2x8x128xf32, #tpu.memory_space<vmem>>, vector<2x8x128xf32>
    tpu.vector_store %arg4[%c0_56, %174, %c0_57], %173 {strides = array<i32>} : memref<2x8x128xf32, #tpu.memory_space<vmem>>, vector<2x8x128xf32>,
    %c1_i32_58 = arith.constant 1 : i32
    %c0_i32_59 = arith.constant 0 : i32
    %176 = arith.cmpi eq, %arg0, %c0_i32_59 : i32
    %177 = arith.extui %176 : i1 to i32
    %c0_i32_60 = arith.constant 0 : i32
    %178 = arith.cmpi ne, %177, %c0_i32_60 : i32
    scf.if %178 {
      %179 = arith.index_cast %arg1 : i32 to index
      %c0_61 = arith.constant 0 : index
      %c0_62 = arith.constant 0 : index
      %180 = vector.load %arg9[%179, %c0_61, %c0_62] : memref<1x2x128xf32, #tpu.memory_space<vmem>>, vector<1x2x128xf32>
      %181 = vector.shape_cast %180 : vector<1x2x128xf32> to vector<2x128xf32>
      %cst_63 = arith.constant dense<0xFF800000> : vector<128xf32>
      %182 = vector.multi_reduction <maximumf>, %181, %cst_63 [0] : vector<2x128xf32> to vector<128xf32>
      %183 = vector.shape_cast %182 : vector<128xf32> to vector<1x128xf32>
      %c0_64 = arith.constant 0 : index
      %c0_65 = arith.constant 0 : index
      %184 = vector.load %arg5[%c0_64, %c0_65] : memref<1x128xf32, #tpu.memory_space<vmem>>, vector<1x128xf32>
      tpu.vector_store %arg5[%c0_64, %c0_65], %183 {strides = array<i32>} : memref<1x128xf32, #tpu.memory_space<vmem>>, vector<1x128xf32>,
    } else {
    }
    return
  }
  func.func @transform_0(%arg0: i32, %arg1: i32) -> (i32, i32, i32) {
    %c0_i32 = arith.constant 0 : i32
    %c0_i32_0 = arith.constant 0 : i32
    %c0_i32_1 = arith.constant 0 : i32
    return %c0_i32, %arg0, %c0_i32_0 : i32, i32, i32
  }
  func.func @transform_1(%arg0: i32, %arg1: i32) -> (i32, i32) {
    %c0_i32 = arith.constant 0 : i32
    %c0_i32_0 = arith.constant 0 : i32
    return %c0_i32, %arg1 : i32, i32
  }
  func.func @transform_2(%arg0: i32, %arg1: i32) -> (i32, i32, i32) {
    %c0_i32 = arith.constant 0 : i32
    %c0_i32_0 = arith.constant 0 : i32
    return %c0_i32, %arg0, %arg1 : i32, i32, i32
  }
  func.func @transform_3(%arg0: i32, %arg1: i32) -> (i32, i32) {
    %c0_i32 = arith.constant 0 : i32
    %c0_i32_0 = arith.constant 0 : i32
    return %c0_i32, %arg1 : i32, i32
  }
}

</mosaic_0001>

<llo_original>
// kernel: tpu_custom_call.1
$region0: #{tpu_custom_call.1}
  #allocation0 [shape = 'u32[]', space=smem, size = 0x4, offset = 0x4, fixed_abs, tag = 'smem constant byte address 0x4 - core index']
  #allocation1 [shape = 'u32[144,128]{1,0:T(1,128)}', space=vmem, size = 0x12000, scoped, tag = 'internal scratch']
  #allocation2 [shape = 'f32[2,8,128]{2,1,0:T(8,128)}', space=vmem, size = 0x2000, scoped, tag = 'scratch operand']
  #allocation3 [shape = 'f32[1,2,128]{2,1,0:T(2,128)}', space=vmem, size = 0x400, scoped, tag = 'scratch operand']
  #allocation4 [shape = 'f32[1,2,128]{2,1,0:T(2,128)}', space=vmem, size = 0x400, scoped, tag = 'scratch operand']
  #allocation5 [shape = 'f32[1,2,128]{2,1,0:T(2,128)}', space=vmem, size = 0x400, scoped, tag = 'scratch operand']
  %s0 = inlined_call_operand.hbm [shape: f32[2,8,32], index: 0, kind: input, shape index: {}]
  %s1 = inlined_call_operand.hbm [shape: bf16[32,128], index: 1, kind: input, shape index: {}]
  %s2 = inlined_call_operand.hbm [shape: f32[2,8,128], index: 2, kind: output, shape index: {0}]
  %s3 = inlined_call_operand.hbm [shape: f32[1,128], index: 3, kind: output, shape index: {1}]
  %4 = xla_tuple %s2, %s3
  %s5 = sld [smem:[#allocation0]]
  $region42: #{tpu_custom_call.1} parent=0
    _
  %s7 = ssub.s32 1, %s5
  %s8 = scalar_select 0, %s7, %s5
  $region1: #{tpu_custom_call.1} parent=0
    #allocation6 [shape = 'u8[8192]{0}', space=vmem, size = 0x2000, scoped, tag = 'input window, operand 0, single buffered']
    #allocation7 [shape = 's32[1]{0}', space=sflag, size = 0x4, scoped, tag = 'scoped memory for tpu_custom_call.1']
    #allocation8 [shape = 's32[1]{0}', space=sflag, size = 0x4, scoped, tag = 'scoped memory for tpu_custom_call.1']
    #allocation9 [shape = 'u8[8192]{0}', space=vmem, size = 0x2000, scoped, tag = 'input window, operand 1, single buffered']
    #allocation10 [shape = 's32[1]{0}', space=sflag, size = 0x4, scoped, tag = 'scoped memory for tpu_custom_call.1']
    #allocation11 [shape = 'u8[8192]{0}', space=vmem, size = 0x2000, scoped, tag = 'output window, operand 0, single buffered']
    #allocation12 [shape = 'u8[512]{0}', space=vmem, size = 0x400, scoped, tag = 'output window, operand 1, single buffered']
    #allocation13 [shape = 's32[1]{0}', space=sflag, size = 0x4, scoped, tag = 'scoped memory for tpu_custom_call.1']
    %9 = vsyncpa [#allocation7], 0
    %10 = vsyncpa [#allocation10], 0
    %11 = vsyncpa [#allocation8], 0
    %12 = vsyncpa [#allocation13], 0
    // Predicated region
    $region2: #{tpu_custom_call.1} parent=1 // pred_check
      _
    $region3: #{tpu_custom_call.1} parent=1 // pred_check_branch
      %14 = sbr.rel (0) target = $region5
    $region4: #{tpu_custom_call.1} parent=1 // pred_region
      %s16 = ssub.s32 256, 256
      %17 = vsyncadd [#allocation7], %s16
      %s18 = sshll.u32 [#allocation6], 4
      %s19 = int_to_ptr.vmem [resolvable:$true] %s18
      %24 = dma.hbm_to_vmem [thread:$0]  %s0, 256, %s19, [#allocation7], 128, 128, 8
    $region5: #{tpu_custom_call.1} parent=1 // pred_fallthru
      _
    // Predicated region
    $region6: #{tpu_custom_call.1} parent=1 // pred_check
      _
    $region7: #{tpu_custom_call.1} parent=1 // pred_check_branch
      %26 = sbr.rel (0) target = $region9
    $region8: #{tpu_custom_call.1} parent=1 // pred_region
      %s28 = ssub.s32 256, 256
      %29 = vsyncadd [#allocation10], %s28
      %s30 = sshll.u32 [#allocation9], 4
      %s31 = int_to_ptr.vmem [resolvable:$true] %s30
      %36 = dma.hbm_to_vmem [thread:$0]  %s1, 256, %s31, [#allocation10], 64, 64, 4
    $region9: #{tpu_custom_call.1} parent=1 // pred_fallthru
      _
    // Predicated region
    $region10: #{tpu_custom_call.1} parent=1 // pred_check
      _
    $region11: #{tpu_custom_call.1} parent=1 // pred_check_branch
      %38 = sbr.rel (0) target = $region13
    $region12: #{tpu_custom_call.1} parent=1 // pred_region
      %39 = dma.done [#allocation7], 256
    $region13: #{tpu_custom_call.1} parent=1 // pred_fallthru
      _
    // Predicated region
    $region14: #{tpu_custom_call.1} parent=1 // pred_check
      _
    $region15: #{tpu_custom_call.1} parent=1 // pred_check_branch
      %41 = sbr.rel (0) target = $region17
    $region16: #{tpu_custom_call.1} parent=1 // pred_region
      %42 = dma.done [#allocation10], 256
    $region17: #{tpu_custom_call.1} parent=1 // pred_fallthru
      _
    %p44 = scmp.eq.s32.totalorder 0, 0
    // Predicated region
    $region18: #{tpu_custom_call.1} parent=1 // pred_check
      %p45 = pneg %p44
    $region19: #{tpu_custom_call.1} parent=1 // pred_check_branch
      %47 = sbr.rel (%p45) target = $region21
    $region20: #{tpu_custom_call.1} parent=1 // pred_region
      %s48 = smul.u32 0, 2
      %s49 = scalar_lea.vmem [#allocation3], %s48
      %50 = vst [vmem:[%s49] sm:$0x3] 0.0
      %s51 = scalar_lea.vmem [#allocation4], %s48
      %52 = vst [vmem:[%s51] sm:$0x3] 0.0
      %s53 = scalar_lea.vmem [#allocation5], %s48
      %54 = vst [vmem:[%s53] sm:$0x3] 0.0
    $region21: #{tpu_custom_call.1} parent=1 // pred_fallthru
      _
    %v55 = vld [vmem:[#allocation6] sm:$0xff]
    %v56 = vld [vmem:[#allocation6 + $0x8] sm:$0xff]
    %v57 = vpack.c.bf16 %v56, %v55
    %v58 = vld [vmem:[#allocation9] sm:$0xf]
    %v59 = vld [vmem:[#allocation9 + $0x4] sm:$0xf]
    %v60 = vld [vmem:[#allocation9 + $0x8] sm:$0xf]
    %v61 = vld [vmem:[#allocation9 + $0xc] sm:$0xf]
    %v66 = vunpack.c.l.b16 %v58
    %v67 = vunpack.c.l.b16 %v59
    %v68 = vunpack.c.l.b16 %v60
    %v69 = vunpack.c.l.b16 %v61
    %v70 = vpack.c.b16 %v67, %v66
    %v71 = vpack.c.b16 %v69, %v68
    %vm74 = vcmask 261120
    %v76 = vsel %vm74, %v57, 0
    %78 = vmatprep.subr.bf16.mxu0 0
    %79 = vmatpush1.bf16.msra.mxu0 %v70
    %80 = vmatprep.subr.bf16.mxu0 0
    %81 = vmatpush1.bf16.msra.mxu0 %v71
    %82 = vmatprep.subr.bf16.mxu0 0
    %83 = vmatpush1.bf16.msra.mxu0 0
    %84 = vmatprep.subr.bf16.mxu0 0
    %85 = vmatpush1.bf16.msra.mxu0 0
    %86 = vmatprep.subr.bf16.mxu0 0
    %87 = vmatpush1.bf16.msra.mxu0 0
    %88 = vmatprep.subr.bf16.mxu0 0
    %89 = vmatpush1.bf16.msra.mxu0 0
    %90 = vmatprep.subr.bf16.mxu0 0
    %91 = vmatpush1.bf16.msra.mxu0 0
    %92 = vmatprep.subr.bf16.mxu0 0
    %93 = vmatpush1.bf16.msra.mxu0 0
    %94 = vmatprep.subr.bf16.mxu0 0
    %95 = vmatpush1.bf16.msra.mxu0 0
    %96 = vmatprep.subr.bf16.mxu0 0
    %97 = vmatpush1.bf16.msra.mxu0 0
    %98 = vmatprep.subr.bf16.mxu0 0
    %99 = vmatpush1.bf16.msra.mxu0 0
    %100 = vmatprep.subr.bf16.mxu0 0
    %101 = vmatpush1.bf16.msra.mxu0 0
    %102 = vmatprep.subr.bf16.mxu0 0
    %103 = vmatpush1.bf16.msra.mxu0 0
    %104 = vmatprep.subr.bf16.mxu0 0
    %105 = vmatpush1.bf16.msra.mxu0 0
    %106 = vmatprep.subr.bf16.mxu0 0
    %107 = vmatpush1.bf16.msra.mxu0 0
    %108 = vmatprep.subr.bf16.mxu0 0
    %109 = vmatpush1.bf16.msra.mxu0 0
    %110 = vmatprep.mubr.bf16.mxu0 0
    %111 = vmatmul.mubr.bf16.gmra.mrb[0].mxu0 %v76
    %v112 = vpop.f32.mrb[0].mxu0
    %v113 = vadd.f32 0.0, %v112
    %v114 = vpop.f32.mrb[0].mxu0
    %v115 = vpop.f32.mrb[0].mxu0
    %v116 = vadd.f32 0.0, %v115
    %v117 = vpop.f32.mrb[0].mxu0
    %118 = vdwg.mxu0
    %119 = vst [vmem:[#allocation2] sm:$0xff] %v113
    %120 = vst [vmem:[#allocation2 + $0x8] sm:$0xff] %v116
    %v121 = vld [vmem:[#allocation2] sm:$0xff]
    %v122 = vld [vmem:[#allocation2 + $0x8] sm:$0xff]
    %s123 = smul.u32 0, 2
    %s124 = scalar_lea.vmem [#allocation3], %s123
    %v125 = vld [vmem:[%s124] sm:$0x3]
    %s126 = scalar_lea.vmem [#allocation4], %s123
    %v127 = vld [vmem:[%s126] sm:$0x3]
    %s128 = scalar_lea.vmem [#allocation5], %s123
    %v129 = vld [vmem:[%s128] sm:$0x3]
    %v130 = vmul.f32 %v125, 0.9
    %v133 = vrot.slane %v122, 7
    %vm134 = vcmask 1041409
    %v135 = vsel %vm134, %v133, %v121
    %v137 = vadd.f32 %v130, %v135
    %v138 = vmul.f32 %v127, 0.8
    %v139 = vadd.f32 %v138, %v137
    %vm140 = vcmp.gt.f32.partialorder %v139, 1.0
    %v141 = vsel %vm140, 1, 0
    %v142 = vcvt.s32.f32 %v141
    %v143 = vsub.f32 %v139, 1.0
    %v144 = vsel %vm140, %v143, %v139
    %v145 = vmax.f32 %v129, %v142
    %v146 = vmul.f32 %v137, 0.9
    %v147 = vrot.slane %v121, 1
    %v148 = vsel %vm134, %v122, %v147
    %v150 = vadd.f32 %v146, %v148
    %v151 = vmul.f32 %v144, 0.8
    %v152 = vadd.f32 %v151, %v150
    %vm153 = vcmp.gt.f32.partialorder %v152, 1.0
    %v154 = vsel %vm153, 1, 0
    %v155 = vcvt.s32.f32 %v154
    %v156 = vsub.f32 %v152, 1.0
    %v157 = vsel %vm153, %v156, %v152
    %v158 = vmax.f32 %v145, %v155
    %v159 = vmul.f32 %v150, 0.9
    %v160 = vrot.slane %v121, 2
    %v161 = vrot.slane %v122, 1
    %v162 = vsel %vm134, %v161, %v160
    %v164 = vadd.f32 %v159, %v162
    %v165 = vmul.f32 %v157, 0.8
    %v166 = vadd.f32 %v165, %v164
    %vm167 = vcmp.gt.f32.partialorder %v166, 1.0
    %v168 = vsel %vm167, 1, 0
    %v169 = vcvt.s32.f32 %v168
    %v170 = vsub.f32 %v166, 1.0
    %v171 = vsel %vm167, %v170, %v166
    %v172 = vmax.f32 %v158, %v169
    %v173 = vmul.f32 %v164, 0.9
    %v174 = vrot.slane %v121, 3
    %v175 = vrot.slane %v122, 2
    %v176 = vsel %vm134, %v175, %v174
    %v178 = vadd.f32 %v173, %v176
    %v179 = vmul.f32 %v171, 0.8
    %v180 = vadd.f32 %v179, %v178
    %vm181 = vcmp.gt.f32.partialorder %v180, 1.0
    %v182 = vsel %vm181, 1, 0
    %v183 = vcvt.s32.f32 %v182
    %v184 = vsub.f32 %v180, 1.0
    %v185 = vsel %vm181, %v184, %v180
    %v186 = vmax.f32 %v172, %v183
    %v187 = vmul.f32 %v178, 0.9
    %v188 = vrot.slane %v121, 4
    %v189 = vrot.slane %v122, 3
    %v190 = vsel %vm134, %v189, %v188
    %v192 = vadd.f32 %v187, %v190
    %v193 = vmul.f32 %v185, 0.8
    %v194 = vadd.f32 %v193, %v192
    %vm195 = vcmp.gt.f32.partialorder %v194, 1.0
    %v196 = vsel %vm195, 1, 0
    %v197 = vcvt.s32.f32 %v196
    %v198 = vsub.f32 %v194, 1.0
    %v199 = vsel %vm195, %v198, %v194
    %v200 = vmax.f32 %v186, %v197
    %v201 = vmul.f32 %v192, 0.9
    %v202 = vrot.slane %v121, 5
    %v203 = vrot.slane %v122, 4
    %v204 = vsel %vm134, %v203, %v202
    %v206 = vadd.f32 %v201, %v204
    %v207 = vmul.f32 %v199, 0.8
    %v208 = vadd.f32 %v207, %v206
    %vm209 = vcmp.gt.f32.partialorder %v208, 1.0
    %v210 = vsel %vm209, 1, 0
    %v211 = vcvt.s32.f32 %v210
    %v212 = vsub.f32 %v208, 1.0
    %v213 = vsel %vm209, %v212, %v208
    %v214 = vmax.f32 %v200, %v211
    %v215 = vmul.f32 %v206, 0.9
    %v216 = vrot.slane %v121, 6
    %v217 = vrot.slane %v122, 5
    %v218 = vsel %vm134, %v217, %v216
    %v220 = vadd.f32 %v215, %v218
    %v221 = vmul.f32 %v213, 0.8
    %v222 = vadd.f32 %v221, %v220
    %vm223 = vcmp.gt.f32.partialorder %v222, 1.0
    %v224 = vsel %vm223, 1, 0
    %v225 = vcvt.s32.f32 %v224
    %v226 = vsub.f32 %v222, 1.0
    %v227 = vsel %vm223, %v226, %v222
    %v228 = vmax.f32 %v214, %v225
    %v229 = vmul.f32 %v220, 0.9
    %v230 = vrot.slane %v121, 7
    %v231 = vrot.slane %v122, 6
    %v232 = vsel %vm134, %v231, %v230
    %v234 = vadd.f32 %v229, %v232
    %v235 = vmul.f32 %v227, 0.8
    %v236 = vadd.f32 %v235, %v234
    %vm237 = vcmp.gt.f32.partialorder %v236, 1.0
    %v238 = vsel %vm237, 1, 0
    %v239 = vcvt.s32.f32 %v238
    %v240 = vsub.f32 %v236, 1.0
    %v241 = vsel %vm237, %v240, %v236
    %v242 = vmax.f32 %v228, %v239
    %243 = vst [vmem:[%s124] sm:$0x3] %v234
    %244 = vst [vmem:[%s126] sm:$0x3] %v241
    %245 = vst [vmem:[%s128] sm:$0x3] %v242
    %v248 = vunpack.c.l.s4 1966171168
    %v249 = vunpack.c.0.s8 %v248
    %v250 = vlaneseq
    %v251 = vshrl.u32 %v250, 7
    %v252 = vsub.s32 %v249, %v251
    %v253 = vrot.slane %v142, %v252
    %v254 = vcombine.high %v253, %v253
    %v256 = vunpack.c.l.s4 1966171168
    %v257 = vunpack.c.0.s8 %v256
    %v258 = vlaneseq
    %v259 = vshrl.u32 %v258, 7
    %v260 = vsub.s32 %v257, %v259
    %v261 = vrot.slane %v253, %v260
    %v263 = vunpack.c.l.s4 1966171168
    %v264 = vunpack.c.0.s8 %v263
    %v265 = vlaneseq
    %v266 = vshrl.u32 %v265, 7
    %v267 = vsub.s32 %v264, %v266
    %v268 = vrot.slane %v254, %v267
    %v273 = vunpack.c.l.s4 1966171168
    %v274 = vunpack.c.0.s8 %v273
    %v275 = vlaneseq
    %v276 = vshrl.u32 %v275, 7
    %v277 = vsub.s32 %v274, %v276
    %v278 = vrot.slane %v155, %v277
    %v279 = vcombine.high %v278, %v278
    %v281 = vunpack.c.l.s4 1966171168
    %v282 = vunpack.c.0.s8 %v281
    %v283 = vlaneseq
    %v284 = vshrl.u32 %v283, 7
    %v285 = vsub.s32 %v282, %v284
    %v286 = vrot.slane %v278, %v285
    %v288 = vunpack.c.l.s4 1966171168
    %v289 = vunpack.c.0.s8 %v288
    %v290 = vlaneseq
    %v291 = vshrl.u32 %v290, 7
    %v292 = vsub.s32 %v289, %v291
    %v293 = vrot.slane %v279, %v292
    %v296 = vunpack.c.l.s4 1966171168
    %v297 = vunpack.c.0.s8 %v296
    %v298 = vlaneseq
    %v299 = vshrl.u32 %v298, 7
    %v300 = vsub.s32 %v297, %v299
    %v301 = vrot.slane %v169, %v300
    %v302 = vcombine.high %v301, %v301
    %v304 = vunpack.c.l.s4 1966171168
    %v305 = vunpack.c.0.s8 %v304
    %v306 = vlaneseq
    %v307 = vshrl.u32 %v306, 7
    %v308 = vsub.s32 %v305, %v307
    %v309 = vrot.slane %v301, %v308
    %v311 = vunpack.c.l.s4 1966171168
    %v312 = vunpack.c.0.s8 %v311
    %v313 = vlaneseq
    %v314 = vshrl.u32 %v313, 7
    %v315 = vsub.s32 %v312, %v314
    %v316 = vrot.slane %v302, %v315
    %v319 = vunpack.c.l.s4 1966171168
    %v320 = vunpack.c.0.s8 %v319
    %v321 = vlaneseq
    %v322 = vshrl.u32 %v321, 7
    %v323 = vsub.s32 %v320, %v322
    %v324 = vrot.slane %v183, %v323
    %v325 = vcombine.high %v324, %v324
    %v327 = vunpack.c.l.s4 1966171168
    %v328 = vunpack.c.0.s8 %v327
    %v329 = vlaneseq
    %v330 = vshrl.u32 %v329, 7
    %v331 = vsub.s32 %v328, %v330
    %v332 = vrot.slane %v324, %v331
    %v334 = vunpack.c.l.s4 1966171168
    %v335 = vunpack.c.0.s8 %v334
    %v336 = vlaneseq
    %v337 = vshrl.u32 %v336, 7
    %v338 = vsub.s32 %v335, %v337
    %v339 = vrot.slane %v325, %v338
    %v342 = vunpack.c.l.s4 1966171168
    %v343 = vunpack.c.0.s8 %v342
    %v344 = vlaneseq
    %v345 = vshrl.u32 %v344, 7
    %v346 = vsub.s32 %v343, %v345
    %v347 = vrot.slane %v197, %v346
    %v348 = vcombine.high %v347, %v347
    %v350 = vunpack.c.l.s4 1966171168
    %v351 = vunpack.c.0.s8 %v350
    %v352 = vlaneseq
    %v353 = vshrl.u32 %v352, 7
    %v354 = vsub.s32 %v351, %v353
    %v355 = vrot.slane %v347, %v354
    %v357 = vunpack.c.l.s4 1966171168
    %v358 = vunpack.c.0.s8 %v357
    %v359 = vlaneseq
    %v360 = vshrl.u32 %v359, 7
    %v361 = vsub.s32 %v358, %v360
    %v362 = vrot.slane %v348, %v361
    %v365 = vunpack.c.l.s4 1966171168
    %v366 = vunpack.c.0.s8 %v365
    %v367 = vlaneseq
    %v368 = vshrl.u32 %v367, 7
    %v369 = vsub.s32 %v366, %v368
    %v370 = vrot.slane %v211, %v369
    %v371 = vcombine.high %v370, %v370
    %v373 = vunpack.c.l.s4 1966171168
    %v374 = vunpack.c.0.s8 %v373
    %v375 = vlaneseq
    %v376 = vshrl.u32 %v375, 7
    %v377 = vsub.s32 %v374, %v376
    %v378 = vrot.slane %v370, %v377
    %v380 = vunpack.c.l.s4 1966171168
    %v381 = vunpack.c.0.s8 %v380
    %v382 = vlaneseq
    %v383 = vshrl.u32 %v382, 7
    %v384 = vsub.s32 %v381, %v383
    %v385 = vrot.slane %v371, %v384
    %v388 = vunpack.c.l.s4 1966171168
    %v389 = vunpack.c.0.s8 %v388
    %v390 = vlaneseq
    %v391 = vshrl.u32 %v390, 7
    %v392 = vsub.s32 %v389, %v391
    %v393 = vrot.slane %v225, %v392
    %v394 = vcombine.high %v393, %v393
    %v396 = vunpack.c.l.s4 1966171168
    %v397 = vunpack.c.0.s8 %v396
    %v398 = vlaneseq
    %v399 = vshrl.u32 %v398, 7
    %v400 = vsub.s32 %v397, %v399
    %v401 = vrot.slane %v393, %v400
    %v403 = vunpack.c.l.s4 1966171168
    %v404 = vunpack.c.0.s8 %v403
    %v405 = vlaneseq
    %v406 = vshrl.u32 %v405, 7
    %v407 = vsub.s32 %v404, %v406
    %v408 = vrot.slane %v394, %v407
    %v411 = vunpack.c.l.s4 1966171168
    %v412 = vunpack.c.0.s8 %v411
    %v413 = vlaneseq
    %v414 = vshrl.u32 %v413, 7
    %v415 = vsub.s32 %v412, %v414
    %v416 = vrot.slane %v239, %v415
    %v417 = vcombine.high %v416, %v416
    %v419 = vunpack.c.l.s4 1966171168
    %v420 = vunpack.c.0.s8 %v419
    %v421 = vlaneseq
    %v422 = vshrl.u32 %v421, 7
    %v423 = vsub.s32 %v420, %v422
    %v424 = vrot.slane %v416, %v423
    %v426 = vunpack.c.l.s4 1966171168
    %v427 = vunpack.c.0.s8 %v426
    %v428 = vlaneseq
    %v429 = vshrl.u32 %v428, 7
    %v430 = vsub.s32 %v427, %v429
    %v431 = vrot.slane %v417, %v430
    %v432 = vlaneseq
    %v433 = vshrl.u32 %v432, 7
    %v434 = vsub.s32 0, %v433
    %v435 = vrot.slane %v286, %v434
    %v436 = vlaneseq
    %v437 = vshrl.u32 %v436, 7
    %v438 = vsub.s32 0, %v437
    %v439 = vrot.slane %v293, %v438
    %v442 = vlaneseq
    %v443 = vshrl.u32 %v442, 7
    %v444 = vsub.s32 0, %v443
    %v445 = vrot.slane %v309, %v444
    %v446 = vlaneseq
    %v447 = vshrl.u32 %v446, 7
    %v448 = vsub.s32 0, %v447
    %v449 = vrot.slane %v316, %v448
    %v452 = vlaneseq
    %v453 = vshrl.u32 %v452, 7
    %v454 = vsub.s32 0, %v453
    %v455 = vrot.slane %v332, %v454
    %v456 = vlaneseq
    %v457 = vshrl.u32 %v456, 7
    %v458 = vsub.s32 0, %v457
    %v459 = vrot.slane %v339, %v458
    %v462 = vlaneseq
    %v463 = vshrl.u32 %v462, 7
    %v464 = vsub.s32 0, %v463
    %v465 = vrot.slane %v355, %v464
    %v466 = vlaneseq
    %v467 = vshrl.u32 %v466, 7
    %v468 = vsub.s32 0, %v467
    %v469 = vrot.slane %v362, %v468
    %v472 = vlaneseq
    %v473 = vshrl.u32 %v472, 7
    %v474 = vsub.s32 0, %v473
    %v475 = vrot.slane %v378, %v474
    %v476 = vlaneseq
    %v477 = vshrl.u32 %v476, 7
    %v478 = vsub.s32 0, %v477
    %v479 = vrot.slane %v385, %v478
    %v482 = vlaneseq
    %v483 = vshrl.u32 %v482, 7
    %v484 = vsub.s32 0, %v483
    %v485 = vrot.slane %v401, %v484
    %v486 = vlaneseq
    %v487 = vshrl.u32 %v486, 7
    %v488 = vsub.s32 0, %v487
    %v489 = vrot.slane %v408, %v488
    %v492 = vlaneseq
    %v493 = vshrl.u32 %v492, 7
    %v494 = vsub.s32 0, %v493
    %v495 = vrot.slane %v424, %v494
    %v496 = vlaneseq
    %v497 = vshrl.u32 %v496, 7
    %v498 = vsub.s32 0, %v497
    %v499 = vrot.slane %v431, %v498
    %vm502 = vcmask 1040384
    %v503 = vsel %vm502, %v261, %v435
    %v504 = vsel %vm502, %v268, %v439
    %vm505 = vcmask 1041408
    %v506 = vsel %vm505, %v503, %v445
    %v507 = vsel %vm505, %v504, %v449
    %vm508 = vcmask 1042432
    %v509 = vsel %vm508, %v506, %v455
    %v510 = vsel %vm508, %v507, %v459
    %vm511 = vcmask 1043456
    %v512 = vsel %vm511, %v509, %v465
    %v513 = vsel %vm511, %v510, %v469
    %vm514 = vcmask 1044480
    %v515 = vsel %vm514, %v512, %v475
    %v516 = vsel %vm514, %v513, %v479
    %vm517 = vcmask 1045504
    %v518 = vsel %vm517, %v515, %v485
    %v519 = vsel %vm517, %v516, %v489
    %vm520 = vcmask 1046528
    %v521 = vsel %vm520, %v518, %v495
    %v522 = vsel %vm520, %v519, %v499
    %523 = vst [vmem:[#allocation11] sm:$0xff] %v521
    %524 = vst [vmem:[#allocation11 + $0x8] sm:$0xff] %v522
    // Predicated region
    $region22: #{tpu_custom_call.1} parent=1 // pred_check
      %p525 = pneg %p44
    $region23: #{tpu_custom_call.1} parent=1 // pred_check_branch
      %527 = sbr.rel (%p525) target = $region25
    $region24: #{tpu_custom_call.1} parent=1 // pred_region
      %v528 = vld [vmem:[%s128] sm:$0x3]
      %v529 = vsel %vm505, %v528, -inf
      %v530 = vrot.slane %v529, 4
      %v531 = vmax.f32 %v529, %v530
      %v532 = vrot.slane %v531, 2
      %v533 = vmax.f32 %v531, %v532
      %v534 = vrot.slane %v533, 1
      %v535 = vmax.f32 %v533, %v534
      %536 = vst [vmem:[#allocation12] sm:$0x1] %v535
    $region25: #{tpu_custom_call.1} parent=1 // pred_fallthru
      _
    // Predicated region
    $region26: #{tpu_custom_call.1} parent=1 // pred_check
      _
    $region27: #{tpu_custom_call.1} parent=1 // pred_check_branch
      %538 = sbr.rel (0) target = $region29
    $region28: #{tpu_custom_call.1} parent=1 // pred_region
      %s540 = ssub.s32 256, 256
      %541 = vsyncadd [#allocation8], %s540
      %s542 = sshll.u32 [#allocation11], 4
      %s543 = int_to_ptr.vmem [resolvable:$true] %s542
      %548 = dma.vmem_to_hbm [thread:$0]  %s543, 256, %s2, [#allocation8], 128, 128, 8
    $region29: #{tpu_custom_call.1} parent=1 // pred_fallthru
      _
    // Predicated region
    $region30: #{tpu_custom_call.1} parent=1 // pred_check
      _
    $region31: #{tpu_custom_call.1} parent=1 // pred_check_branch
      %550 = sbr.rel (0) target = $region33
    $region32: #{tpu_custom_call.1} parent=1 // pred_region
      %s552 = ssub.s32 16, 16
      %553 = vsyncadd [#allocation13], %s552
      %s555 = sshll.u32 [#allocation12], 4
      %s556 = int_to_ptr.vmem [resolvable:$true] %s555
      %558 = dma.vmem_to_hbm [thread:$0]  %s556, 16, %s3, [#allocation13]
    $region33: #{tpu_custom_call.1} parent=1 // pred_fallthru
      _
    // Predicated region
    $region34: #{tpu_custom_call.1} parent=1 // pred_check
      _
    $region35: #{tpu_custom_call.1} parent=1 // pred_check_branch
      %560 = sbr.rel (0) target = $region37
    $region36: #{tpu_custom_call.1} parent=1 // pred_region
      %561 = dma.done [#allocation8], 256
    $region37: #{tpu_custom_call.1} parent=1 // pred_fallthru
      _
    // Predicated region
    $region38: #{tpu_custom_call.1} parent=1 // pred_check
      _
    $region39: #{tpu_custom_call.1} parent=1 // pred_check_branch
      %563 = sbr.rel (0) target = $region41
    $region40: #{tpu_custom_call.1} parent=1 // pred_region
      %564 = dma.done [#allocation13], 16
    $region41: #{tpu_custom_call.1} parent=1 // pred_fallthru
      _
    %565 = vsyncpa [#allocation7], 1
    %566 = vsyncpa [#allocation10], 1
    %567 = vsyncpa [#allocation8], 1
    %568 = vsyncpa [#allocation13], 1

</llo_original>
